<compile_context>
chip_gen: v5e
topology: v5e:2x2
jax: 0.10.0
libtpu: 0.0.40
codegen_flags: <defaults>
</compile_context>

<pallas_src>
import functools

import jax
import jax.numpy as jnp
from jax.experimental import pallas as pl
from jax.experimental.pallas import tpu as pltpu


# --------------------------------------------------------------------------
# Kernels
# --------------------------------------------------------------------------
def _qk(q, k):
    # s[h, i, j] = sum_d q[h, i, d] * k[h, j, d] -- no explicit transpose of k.
    return jax.lax.dot_general(
        q, k, dimension_numbers=(((2,), (2,)), ((0,), (0,))),
        preferred_element_type=jnp.float32)


def _pv(p, v):
    # o[h, i, d] = sum_j p[h, i, j] * v[h, j, d]
    return jax.lax.dot_general(
        p, v, dimension_numbers=(((2,), (1,)), ((0,), (0,))),
        preferred_element_type=jnp.float32)


def _attention_single_block_kernel(q_ref, k_ref, v_ref, o_ref, *,
                                   scale, matmul_dtype):
    """All of k/v is resident in one block: plain (stable) softmax, no scratch."""
    q = q_ref[0] * scale          # (H, tq, D) -- fold softmax scale into q
    k = k_ref[0]                  # (H, Nk, D)
    v = v_ref[0]                  # (H, Nk, D)
    if matmul_dtype is not None:
        q = q.astype(matmul_dtype)
        k = k.astype(matmul_dtype)
        v = v.astype(matmul_dtype)

    s = _qk(q, k)                                          # (H, tq, Nk) f32
    m = jnp.max(s, axis=-1, keepdims=True)
    p = jnp.exp(s - m)
    l = jnp.sum(p, axis=-1, keepdims=True)
    o = _pv(p.astype(v.dtype), v)                          # (H, tq, D) f32
    o_ref[0] = (o * pl.reciprocal(l, approx=True)).astype(o_ref.dtype)


def _flash_attention_kernel(q_ref, k_ref, v_ref, o_ref,
                            m_sc, l_sc, acc_sc, *, scale, matmul_dtype):
    """Online-softmax (flash) path for tiled k/v."""
    kv_idx = pl.program_id(2)

    @pl.when(kv_idx == 0)
    def _init():
        m_sc[...] = jnp.full(m_sc.shape, -jnp.inf, dtype=m_sc.dtype)
        l_sc[...] = jnp.zeros(l_sc.shape, dtype=l_sc.dtype)
        acc_sc[...] = jnp.zeros(acc_sc.shape, dtype=acc_sc.dtype)

    q = q_ref[0] * scale          # (H, tq, D)
    k = k_ref[0]                  # (H, tk, D)
    v = v_ref[0]                  # (H, tk, D)
    if matmul_dtype is not None:
        q = q.astype(matmul_dtype)
        k = k.astype(matmul_dtype)
        v = v.astype(matmul_dtype)

    s = _qk(q, k)                                          # (H, tq, tk) f32

    # Online softmax update.
    m_prev = m_sc[...]                                     # (H, tq, 1)
    m_new = jnp.maximum(m_prev, jnp.max(s, axis=-1, keepdims=True))
    alpha = jnp.exp(m_prev - m_new)                        # rescale old stats
    p = jnp.exp(s - m_new)                                 # unnormalized probs

    l_sc[...] = alpha * l_sc[...] + jnp.sum(p, axis=-1, keepdims=True)
    acc_sc[...] = alpha * acc_sc[...] + _pv(p.astype(v.dtype), v)
    m_sc[...] = m_new

    @pl.when(kv_idx == pl.num_programs(2) - 1)
    def _finalize():
        inv_l = pl.reciprocal(l_sc[...], approx=True)      # EUP, ~free slot
        o_ref[0] = (acc_sc[...] * inv_l).astype(o_ref.dtype)


# --------------------------------------------------------------------------
# Wrapper
# --------------------------------------------------------------------------
def _pick_tile(n, max_tile):
    """Largest lane/sublane-friendly tile <= max_tile that evenly divides n."""
    if n <= max_tile:
        return n
    for t in (max_tile, 512, 256, 128, 64, 32, 16, 8):
        if t <= max_tile and n % t == 0:
            return t
    for t in range(max_tile, 0, -1):   # fallback: any divisor
        if n % t == 0:
            return t
    return n


def attention(q, k, v, *, num_heads=None, q_tile=256, kv_tile=256,
              matmul_dtype=None):
    """Flash attention. q: [B, H, Nq, D]; k, v: [B, H, Nk, D]. Returns [B, H, Nq, D]."""
    B, H, Nq, D = q.shape
    Bk, Hk, Nk, Dk = k.shape
    assert k.shape == v.shape
    assert (B, H, D) == (Bk, Hk, Dk)
    if num_heads is not None:
        assert H == num_heads
    scale = float(D) ** -0.5

    tq = _pick_tile(Nq, q_tile)
    tk = _pick_tile(Nk, kv_tile)
    num_kv_blocks = Nk // tk

    q_spec3 = pl.BlockSpec((1, H, tq, D), lambda b, qi, ki: (b, 0, qi, 0))
    kv_spec3 = pl.BlockSpec((1, H, tk, D), lambda b, qi, ki: (b, 0, ki, 0))

    if num_kv_blocks == 1:
        # Common MixTransformer case (spatially reduced k/v): no online
        # softmax, no scratch, fully parallel grid.
        kernel = functools.partial(_attention_single_block_kernel,
                                   scale=scale, matmul_dtype=matmul_dtype)
        grid = (B, Nq // tq)
        q_spec = pl.BlockSpec((1, H, tq, D), lambda b, qi: (b, 0, qi, 0))
        kv_spec = pl.BlockSpec((1, H, Nk, D), lambda b, qi: (b, 0, 0, 0))
        grid_spec = pltpu.PrefetchScalarGridSpec(
            num_scalar_prefetch=0, grid=grid,
            in_specs=[q_spec, kv_spec, kv_spec],
            out_specs=q_spec,
            scratch_shapes=[])
        dim_sem = ("parallel", "parallel")
    else:
        kernel = functools.partial(_flash_attention_kernel,
                                   scale=scale, matmul_dtype=matmul_dtype)
        grid = (B, Nq // tq, num_kv_blocks)
        grid_spec = pltpu.PrefetchScalarGridSpec(
            num_scalar_prefetch=0, grid=grid,
            in_specs=[q_spec3, kv_spec3, kv_spec3],
            out_specs=q_spec3,
            scratch_shapes=[
                pltpu.VMEM((H, tq, 1), jnp.float32),   # running max m
                pltpu.VMEM((H, tq, 1), jnp.float32),   # running denom l
                pltpu.VMEM((H, tq, D), jnp.float32),   # unnormalized output
            ])
        dim_sem = ("parallel", "parallel", "arbitrary")

    return pl.pallas_call(
        kernel,
        out_shape=jax.ShapeDtypeStruct((B, H, Nq, D), q.dtype),
        grid_spec=grid_spec,
        compiler_params=pltpu.CompilerParams(dimension_semantics=dim_sem),
    )(q, k, v)


def attention_reference(q, k, v):
    scale = float(q.shape[-1]) ** -0.5
    s = jnp.einsum("bhnd,bhmd->bhnm", q, k) * scale
    p = jax.nn.softmax(s, axis=-1)
    return jnp.einsum("bhnm,bhmd->bhnd", p, v)


if __name__ == "__main__":
    key = jax.random.PRNGKey(0)
    keys = jax.random.split(key, 9)

    # Case 1: small shapes consistent with the module (embed_dims=32,
    # num_heads=4 -> head_dim=8), Nq == Nk == 8.  Exercises single-kv-block path.
    B, H, N, D = 2, 4, 8, 8
    q = jax.random.normal(keys[0], (B, H, N, D), dtype=jnp.float32)
    kk = jax.random.normal(keys[1], (B, H, N, D), dtype=jnp.float32)
    vv = jax.random.normal(keys[2], (B, H, N, D), dtype=jnp.float32)
    out = jax.block_until_ready(attention(q, kk, vv, num_heads=H))
    ref = attention_reference(q, kk, vv)
    assert out.shape == (B, H, N, D)
    assert jnp.allclose(out, ref, atol=1e-2, rtol=1e-2), \
        float(jnp.max(jnp.abs(out - ref)))

    # Case 2: longer q sequence with spatially-reduced k/v (Nk < Nq), tiled so
    # the flash (online-softmax) path runs with multiple q and kv tiles.
    B2, H2, Nq2, Nk2, D2 = 1, 2, 512, 256, 16
    q2 = jax.random.normal(keys[3], (B2, H2, Nq2, D2), dtype=jnp.float32)
    kk2 = jax.random.normal(keys[4], (B2, H2, Nk2, D2), dtype=jnp.float32)
    vv2 = jax.random.normal(keys[5], (B2, H2, Nk2, D2), dtype=jnp.float32)
    out2 = jax.block_until_ready(
        attention(q2, kk2, vv2, num_heads=H2, q_tile=128, kv_tile=128))
    ref2 = attention_reference(q2, kk2, vv2)
    assert jnp.allclose(out2, ref2, atol=1e-2, rtol=1e-2), \
        float(jnp.max(jnp.abs(out2 - ref2)))

    # Case 3: MixTransformer-like regime: many q tiles, single small kv block.
    B3, H3, Nq3, Nk3, D3 = 1, 2, 256, 64, 32
    q3 = jax.random.normal(keys[6], (B3, H3, Nq3, D3), dtype=jnp.float32)
    kk3 = jax.random.normal(keys[7], (B3, H3, Nk3, D3), dtype=jnp.float32)
    vv3 = jax.random.normal(keys[8], (B3, H3, Nk3, D3), dtype=jnp.float32)
    out3 = jax.block_until_ready(
        attention(q3, kk3, vv3, num_heads=H3, q_tile=128, kv_tile=128))
    ref3 = attention_reference(q3, kk3, vv3)
    assert jnp.allclose(out3, ref3, atol=1e-2, rtol=1e-2), \
        float(jnp.max(jnp.abs(out3 - ref3)))

    # TODO(synk): attn_drop (training-mode dropout) is not implemented; this
    # matches the module in eval mode / attn_drop=0.0.
    print("KERNEL_OK")
</pallas_src>

<mosaic_0001>
module attributes {stable_mosaic.version = 11 : i64} {
  func.func @_attention_single_block_kernel(%arg0: i32, %arg1: i32, %arg2: memref<1x4x8x8xf32, #tpu.memory_space<vmem>>, %arg3: memref<1x4x8x8xf32, #tpu.memory_space<vmem>>, %arg4: memref<1x4x8x8xf32, #tpu.memory_space<vmem>>, %arg5: memref<1x4x8x8xf32, #tpu.memory_space<vmem>>) attributes {dimension_semantics = [#tpu.dimension_semantics<parallel>, #tpu.dimension_semantics<parallel>], iteration_bounds = array<i64: 2, 1>, scalar_prefetch = 0 : i64, scratch_operands = 0 : i64, tpu.core_type = #tpu.core_type<tc>, window_params = [{transform_indices = @transform_0, window_bounds = array<i64: 1, 4, 8, 8>}, {transform_indices = @transform_1, window_bounds = array<i64: 1, 4, 8, 8>}, {transform_indices = @transform_2, window_bounds = array<i64: 1, 4, 8, 8>}, {transform_indices = @transform_3, window_bounds = array<i64: 1, 4, 8, 8>}]} {
    %c0 = arith.constant 0 : index
    %c0_0 = arith.constant 0 : index
    %c0_1 = arith.constant 0 : index
    %c0_2 = arith.constant 0 : index
    %0 = vector.load %arg2[%c0, %c0_0, %c0_1, %c0_2] : memref<1x4x8x8xf32, #tpu.memory_space<vmem>>, vector<1x4x8x8xf32>
    %1 = vector.shape_cast %0 : vector<1x4x8x8xf32> to vector<4x8x8xf32>
    %cst = arith.constant 0.353553385 : f32
    %2 = vector.broadcast %cst : f32 to vector<4x8x8xf32>
    %3 = arith.mulf %1, %2 : vector<4x8x8xf32>
    %c0_3 = arith.constant 0 : index
    %c0_4 = arith.constant 0 : index
    %c0_5 = arith.constant 0 : index
    %c0_6 = arith.constant 0 : index
    %4 = vector.load %arg3[%c0_3, %c0_4, %c0_5, %c0_6] : memref<1x4x8x8xf32, #tpu.memory_space<vmem>>, vector<1x4x8x8xf32>
    %5 = vector.shape_cast %4 : vector<1x4x8x8xf32> to vector<4x8x8xf32>
    %c0_7 = arith.constant 0 : index
    %c0_8 = arith.constant 0 : index
    %c0_9 = arith.constant 0 : index
    %c0_10 = arith.constant 0 : index
    %6 = vector.load %arg4[%c0_7, %c0_8, %c0_9, %c0_10] : memref<1x4x8x8xf32, #tpu.memory_space<vmem>>, vector<1x4x8x8xf32>
    %7 = vector.shape_cast %6 : vector<1x4x8x8xf32> to vector<4x8x8xf32>
    %cst_11 = arith.constant dense<0.000000e+00> : vector<4x8x8xf32>
    %8 = tpu.matmul %3, %5, %cst_11 {dimension_numbers = #tpu.dot_dimension_numbers<[2], [2], [1], [1], [0, 0, 0, 1, 1, 1], [0], [0]>} : vector<4x8x8xf32>, vector<4x8x8xf32>, vector<4x8x8xf32> -> vector<4x8x8xf32>
    %cst_12 = arith.constant dense<0xFF800000> : vector<4x8xf32>
    %9 = vector.multi_reduction <maximumf>, %8, %cst_12 [2] : vector<4x8x8xf32> to vector<4x8xf32>
    %10 = vector.shape_cast %9 : vector<4x8xf32> to vector<4x8x1xf32>
    %11 = vector.broadcast %10 : vector<4x8x1xf32> to vector<4x8x8xf32>
    %12 = arith.subf %8, %11 : vector<4x8x8xf32>
    %13 = math.exp %12 : vector<4x8x8xf32>
    %cst_13 = arith.constant dense<0.000000e+00> : vector<4x8xf32>
    %14 = vector.multi_reduction <add>, %13, %cst_13 [2] : vector<4x8x8xf32> to vector<4x8xf32>
    %15 = vector.shape_cast %14 : vector<4x8xf32> to vector<4x8x1xf32>
    %cst_14 = arith.constant dense<0.000000e+00> : vector<4x8x8xf32>
    %16 = tpu.matmul %13, %7, %cst_14 {dimension_numbers = #tpu.dot_dimension_numbers<[2], [1], [1], [2], [0, 0, 0, 1, 1, 2], [0], [0]>} : vector<4x8x8xf32>, vector<4x8x8xf32>, vector<4x8x8xf32> -> vector<4x8x8xf32>
    %17 = tpu.reciprocal %15 {approx = true} : vector<4x8x1xf32> -> vector<4x8x1xf32>
    %18 = vector.broadcast %17 : vector<4x8x1xf32> to vector<4x8x8xf32>
    %19 = arith.mulf %16, %18 : vector<4x8x8xf32>
    %c0_15 = arith.constant 0 : index
    %c0_16 = arith.constant 0 : index
    %c0_17 = arith.constant 0 : index
    %c0_18 = arith.constant 0 : index
    %20 = vector.load %arg5[%c0_15, %c0_16, %c0_17, %c0_18] : memref<1x4x8x8xf32, #tpu.memory_space<vmem>>, vector<1x4x8x8xf32>
    %21 = vector.shape_cast %20 : vector<1x4x8x8xf32> to vector<4x8x8xf32>
    %22 = vector.shape_cast %19 : vector<4x8x8xf32> to vector<1x4x8x8xf32>
    tpu.vector_store %arg5[%c0_15, %c0_16, %c0_17, %c0_18], %22 {strides = array<i32>} : memref<1x4x8x8xf32, #tpu.memory_space<vmem>>, vector<1x4x8x8xf32>,
    return
  }
  func.func @transform_0(%arg0: i32, %arg1: i32) -> (i32, i32, i32, i32) {
    %c0_i32 = arith.constant 0 : i32
    %c0_i32_0 = arith.constant 0 : i32
    %c0_i32_1 = arith.constant 0 : i32
    return %arg0, %c0_i32, %arg1, %c0_i32_0 : i32, i32, i32, i32
  }
  func.func @transform_1(%arg0: i32, %arg1: i32) -> (i32, i32, i32, i32) {
    %c0_i32 = arith.constant 0 : i32
    %c0_i32_0 = arith.constant 0 : i32
    %c0_i32_1 = arith.constant 0 : i32
    %c0_i32_2 = arith.constant 0 : i32
    return %arg0, %c0_i32, %c0_i32_0, %c0_i32_1 : i32, i32, i32, i32
  }
  func.func @transform_2(%arg0: i32, %arg1: i32) -> (i32, i32, i32, i32) {
    %c0_i32 = arith.constant 0 : i32
    %c0_i32_0 = arith.constant 0 : i32
    %c0_i32_1 = arith.constant 0 : i32
    %c0_i32_2 = arith.constant 0 : i32
    return %arg0, %c0_i32, %c0_i32_0, %c0_i32_1 : i32, i32, i32, i32
  }
  func.func @transform_3(%arg0: i32, %arg1: i32) -> (i32, i32, i32, i32) {
    %c0_i32 = arith.constant 0 : i32
    %c0_i32_0 = arith.constant 0 : i32
    %c0_i32_1 = arith.constant 0 : i32
    return %arg0, %c0_i32, %arg1, %c0_i32_0 : i32, i32, i32, i32
  }
}

</mosaic_0001>

<llo_original>
// kernel: tpu_custom_call.1
$region0: #{tpu_custom_call.1}
  #allocation0 [shape = 'u32[]', space=smem, size = 0x4, offset = 0x4, fixed_abs, tag = 'smem constant byte address 0x4 - core index']
  #allocation1 [shape = 'u32[72,128]{1,0:T(1,128)}', space=vmem, size = 0x9000, scoped, tag = 'internal scratch']
  %s0 = inlined_call_operand.hbm [shape: f32[2,4,8,8], index: 0, kind: input, shape index: {}]
  %s1 = inlined_call_operand.hbm [shape: f32[2,4,8,8], index: 1, kind: input, shape index: {}]
  %s2 = inlined_call_operand.hbm [shape: f32[2,4,8,8], index: 2, kind: input, shape index: {}]
  %s3 = inlined_call_operand.hbm [shape: f32[2,4,8,8], index: 3, kind: output, shape index: {}]
  %s4 = sld [smem:[#allocation0]]
  $region57: #{tpu_custom_call.1} parent=0
    _
  %s6 = ssub.s32 1, %s4
  %s7 = scalar_select 0, %s6, %s4
  $region1: #{tpu_custom_call.1} parent=0
    #allocation2 [shape = 'u8[32768]{0}', space=vmem, size = 0x8000, scoped, tag = 'input window, operand 0']
    #allocation3 [shape = 's32[2]{0}', space=sflag, size = 0x8, scoped, tag = 'scoped memory for tpu_custom_call.1']
    #allocation4 [shape = 's32[2]{0}', space=sflag, size = 0x8, scoped, tag = 'scoped memory for tpu_custom_call.1']
    #allocation5 [shape = 'u8[32768]{0}', space=vmem, size = 0x8000, scoped, tag = 'input window, operand 1']
    #allocation6 [shape = 's32[2]{0}', space=sflag, size = 0x8, scoped, tag = 'scoped memory for tpu_custom_call.1']
    #allocation7 [shape = 'u8[32768]{0}', space=vmem, size = 0x8000, scoped, tag = 'input window, operand 2']
    #allocation8 [shape = 'u8[32768]{0}', space=vmem, size = 0x8000, scoped, tag = 'output window, operand 0']
    %8 = vsyncpa [#allocation3], 0
    %s9 = scalar_lea.sflag [#allocation3], 1
    %10 = vsyncpa %s9, 0
    %11 = vsyncpa [#allocation6], 0
    %s12 = scalar_lea.sflag [#allocation6], 1
    %13 = vsyncpa %s12, 0
    %14 = vsyncpa [#allocation4], 0
    %s15 = scalar_lea.sflag [#allocation4], 1
    %16 = vsyncpa %s15, 0
    loop: start=0, step=1, limit=4
    $region2: #{tpu_custom_call.1} parent=1 // loop_pre_header
      _
    $region3: #{tpu_custom_call.1} parent=1 // loop_header
      %s18 = sphi 0, %s22
      %p19 = scmp.ge.s32.totalorder %s18, 4
      %s25 = sphi 0, %s37
      %s26 = sphi 0, %s33
      %s27 = sphi 0, %s25
      %s28 = sphi 0, %s26
      %s29 = sphi 0, %s27
      %s30 = sphi 0, %s28
      %s42 = sphi 0, %s44
      %s45 = sphi 0, %s42
      %s46 = sphi 0, %s45
      %s62 = sphi 0, %s46
      %s68 = sphi 0, %s70
      %s71 = sphi 0, %s68
      %s72 = sphi 0, %s71
      %s88 = sphi 0, %s72
      %s94 = sphi 0, %s96
      %s97 = sphi 0, %s94
      %s98 = sphi 0, %s97
      %s114 = sphi 0, %s98
      %s122 = sphi 0, %s124
      %s125 = sphi 0, %s122
      %s126 = sphi 0, %s125
      %s142 = sphi 0, %s126
    $region4: #{tpu_custom_call.1} parent=1 // loop_header_branch
      %21 = sbr.rel (%p19) target = $region8
    $region5: #{tpu_custom_call.1} parent=1 // loop_body
      %s23 = ssub.s32 %s18, 1
      %s24 = ssub.s32 %s18, 2
      %s31 = sadd.s32 1, %s26
      %p32 = scmp.ge.s32.totalorder %s31, 1
      %s33 = scalar_select %p32, 0, %s31
      %s34 = sadd.s32 1, %s25
      %s35 = scalar_select %p32, %s34, %s25
      %p36 = scmp.ge.s32.totalorder %s35, 2
      %s37 = scalar_select %p36, 0, %s35
      %s38 = ssub.s32 %s25, %s37
      %s39 = ssub.s32 %s26, %s33
      %s40 = sor.u32 %s38, %s39
      %p41 = scmp.eq.s32.totalorder %s40, 0
      %s43 = sadd.s32 %s42, 1
      %s44 = scalar_select %p41, %s42, %s43
      %p47 = pneg %p41
      %p48 = scmp.eq.s32.totalorder %s18, 1
      %p49 = por %p47, %p48
      %p50 = scmp.ne.s32.totalorder %s42, %s45
      %p51 = scmp.eq.s32.totalorder %s18, 0
      %p52 = por %p50, %p51
      %p53 = scmp.ne.s32.totalorder %s42, %s45
      %p54 = scmp.eq.s32.totalorder %s23, 1
      %p55 = por %p53, %p54
      %p56 = scmp.ne.s32.totalorder %s45, %s46
      %p57 = scmp.eq.s32.totalorder %s23, 0
      %p58 = por %p56, %p57
      %p59 = scmp.ne.s32.totalorder %s45, %s46
      %p60 = scmp.eq.s32.totalorder %s24, 1
      %p61 = por %p59, %p60
      %p63 = scmp.ne.s32.totalorder %s46, %s62
      %p64 = scmp.eq.s32.totalorder %s24, 0
      %p65 = por %p63, %p64
      %s66 = ssub.s32 %s25, %s37
      %p67 = scmp.eq.s32.totalorder %s66, 0
      %s69 = sadd.s32 %s68, 1
      %s70 = scalar_select %p67, %s68, %s69
      %p73 = pneg %p67
      %p74 = scmp.eq.s32.totalorder %s18, 1
      %p75 = por %p73, %p74
      %p76 = scmp.ne.s32.totalorder %s68, %s71
      %p77 = scmp.eq.s32.totalorder %s18, 0
      %p78 = por %p76, %p77
      %p79 = scmp.ne.s32.totalorder %s68, %s71
      %p80 = scmp.eq.s32.totalorder %s23, 1
      %p81 = por %p79, %p80
      %p82 = scmp.ne.s32.totalorder %s71, %s72
      %p83 = scmp.eq.s32.totalorder %s23, 0
      %p84 = por %p82, %p83
      %p85 = scmp.ne.s32.totalorder %s71, %s72
      %p86 = scmp.eq.s32.totalorder %s24, 1
      %p87 = por %p85, %p86
      %p89 = scmp.ne.s32.totalorder %s72, %s88
      %p90 = scmp.eq.s32.totalorder %s24, 0
      %p91 = por %p89, %p90
      %s92 = ssub.s32 %s25, %s37
      %p93 = scmp.eq.s32.totalorder %s92, 0
      %s95 = sadd.s32 %s94, 1
      %s96 = scalar_select %p93, %s94, %s95
      %p99 = pneg %p93
      %p100 = scmp.eq.s32.totalorder %s18, 1
      %p101 = por %p99, %p100
      %p102 = scmp.ne.s32.totalorder %s94, %s97
      %p103 = scmp.eq.s32.totalorder %s18, 0
      %p104 = por %p102, %p103
      %p105 = scmp.ne.s32.totalorder %s94, %s97
      %p106 = scmp.eq.s32.totalorder %s23, 1
      %p107 = por %p105, %p106
      %p108 = scmp.ne.s32.totalorder %s97, %s98
      %p109 = scmp.eq.s32.totalorder %s23, 0
      %p110 = por %p108, %p109
      %p111 = scmp.ne.s32.totalorder %s97, %s98
      %p112 = scmp.eq.s32.totalorder %s24, 1
      %p113 = por %p111, %p112
      %p115 = scmp.ne.s32.totalorder %s98, %s114
      %p116 = scmp.eq.s32.totalorder %s24, 0
      %p117 = por %p115, %p116
      %s118 = ssub.s32 %s25, %s37
      %s119 = ssub.s32 %s26, %s33
      %s120 = sor.u32 %s118, %s119
      %p121 = scmp.eq.s32.totalorder %s120, 0
      %s123 = sadd.s32 %s122, 1
      %s124 = scalar_select %p121, %s122, %s123
      %p127 = pneg %p121
      %p128 = scmp.eq.s32.totalorder %s18, 1
      %p129 = por %p127, %p128
      %p130 = scmp.ne.s32.totalorder %s122, %s125
      %p131 = scmp.eq.s32.totalorder %s18, 0
      %p132 = por %p130, %p131
      %p133 = scmp.ne.s32.totalorder %s122, %s125
      %p134 = scmp.eq.s32.totalorder %s23, 1
      %p135 = por %p133, %p134
      %p136 = scmp.ne.s32.totalorder %s125, %s126
      %p137 = scmp.eq.s32.totalorder %s23, 0
      %p138 = por %p136, %p137
      %p139 = scmp.ne.s32.totalorder %s125, %s126
      %p140 = scmp.eq.s32.totalorder %s24, 1
      %p141 = por %p139, %p140
      %p143 = scmp.ne.s32.totalorder %s126, %s142
      %p144 = scmp.eq.s32.totalorder %s24, 0
      %p145 = por %p143, %p144
      %p146 = scmp.le.s32.totalorder 1, %s18
      %p147 = scmp.lt.s32.totalorder %s18, 3
      %p148 = pnand %p146, %p147
      %p149 = pneg %p148
      // Predicated region
      $region9: #{tpu_custom_call.1} parent=5 // pred_check
        _
      $region10: #{tpu_custom_call.1} parent=5 // pred_check_branch
        %151 = sbr.rel (%p148) target = $region12
      $region11: #{tpu_custom_call.1} parent=5 // pred_region
        %s152 = ssub.s32 %s18, 1
      $region12: #{tpu_custom_call.1} parent=5 // pred_fallthru
        _
      %p153 = scmp.lt.s32.totalorder %s18, 2
      // Predicated region
      $region13: #{tpu_custom_call.1} parent=5 // pred_check
        %p154 = pneg %p153
      $region14: #{tpu_custom_call.1} parent=5 // pred_check_branch
        %156 = sbr.rel (%p154) target = $region16
      $region15: #{tpu_custom_call.1} parent=5 // pred_region
        // Predicated region
        $region17: #{tpu_custom_call.1} parent=15 // pred_check
          %p157 = pneg %p52
        $region18: #{tpu_custom_call.1} parent=15 // pred_check_branch
          %159 = sbr.rel (%p157) target = $region20
        $region19: #{tpu_custom_call.1} parent=15 // pred_region
          %s160 = sand.u32 %s42, 1
          %s161 = scalar_lea.sflag [#allocation3], %s160
          %s162 = sand.u32 %s42, 1
          %s163 = smul.addr %s162, 32
          %s164 = scalar_lea.vmem [#allocation2], %s163
          %166 = vsyncadd %s161, 0
          %s167 = smul.addr %s25, 4
          %s168 = sadd.s32 %s26, %s167
          %s169 = smul.addr %s168, 8
          %s170 = scalar_lea.hbm %s0, %s169
          %s171 = sshll.u32 %s170, 4
          %s172 = int_to_ptr.hbm [resolvable:$true] %s171
          %s173 = sshll.u32 %s164, 4
          %s174 = int_to_ptr.vmem [resolvable:$true] %s173
          %179 = dma.hbm_to_vmem [thread:$0]  %s172, 512, %s174, %s161, 128, 128, 8
        $region20: #{tpu_custom_call.1} parent=15 // pred_fallthru
          _
        // Predicated region
        $region21: #{tpu_custom_call.1} parent=15 // pred_check
          %p180 = pneg %p78
        $region22: #{tpu_custom_call.1} parent=15 // pred_check_branch
          %182 = sbr.rel (%p180) target = $region24
        $region23: #{tpu_custom_call.1} parent=15 // pred_region
          %s183 = sand.u32 %s18, 1
          %s184 = scalar_lea.sflag [#allocation6], %s183
          %s185 = sand.u32 %s68, 1
          %s186 = smul.addr %s185, 32
          %s187 = scalar_lea.vmem [#allocation5], %s186
          %189 = vsyncadd %s184, 0
          %s190 = smul.addr %s25, 4
          %s191 = smul.addr %s190, 8
          %s192 = scalar_lea.hbm %s1, %s191
          %s193 = sshll.u32 %s192, 4
          %s194 = int_to_ptr.hbm [resolvable:$true] %s193
          %s195 = sshll.u32 %s187, 4
          %s196 = int_to_ptr.vmem [resolvable:$true] %s195
          %201 = dma.hbm_to_vmem [thread:$0]  %s194, 512, %s196, %s184, 128, 128, 8
        $region24: #{tpu_custom_call.1} parent=15 // pred_fallthru
          _
        // Predicated region
        $region25: #{tpu_custom_call.1} parent=15 // pred_check
          %p202 = pneg %p104
        $region26: #{tpu_custom_call.1} parent=15 // pred_check_branch
          %204 = sbr.rel (%p202) target = $region28
        $region27: #{tpu_custom_call.1} parent=15 // pred_region
          %s205 = sand.u32 %s18, 1
          %s206 = scalar_lea.sflag [#allocation6], %s205
          %s207 = sand.u32 %s94, 1
          %s208 = smul.addr %s207, 32
          %s209 = scalar_lea.vmem [#allocation7], %s208
          %211 = vsyncadd %s206, 0
          %s212 = smul.addr %s25, 4
          %s213 = smul.addr %s212, 8
          %s214 = scalar_lea.hbm %s2, %s213
          %s215 = sshll.u32 %s214, 4
          %s216 = int_to_ptr.hbm [resolvable:$true] %s215
          %s217 = sshll.u32 %s209, 4
          %s218 = int_to_ptr.vmem [resolvable:$true] %s217
          %223 = dma.hbm_to_vmem [thread:$0]  %s216, 512, %s218, %s206, 128, 128, 8
        $region28: #{tpu_custom_call.1} parent=15 // pred_fallthru
          _
      $region16: #{tpu_custom_call.1} parent=5 // pred_fallthru
        _
      %p224 = scmp.le.s32.totalorder 1, %s18
      %p225 = scmp.lt.s32.totalorder %s18, 3
      %p226 = pnand %p224, %p225
      %p227 = pneg %p226
      // Predicated region
      $region29: #{tpu_custom_call.1} parent=5 // pred_check
        _
      $region30: #{tpu_custom_call.1} parent=5 // pred_check_branch
        %229 = sbr.rel (%p226) target = $region32
      $region31: #{tpu_custom_call.1} parent=5 // pred_region
        %s230 = ssub.s32 %s18, 1
        %s231 = sand.u32 %s45, 1
        %s232 = scalar_lea.sflag [#allocation3], %s231
        %s233 = sand.u32 %s45, 1
        %s234 = smul.addr %s233, 32
        %s235 = scalar_lea.vmem [#allocation2], %s234
        // Predicated region
        $region33: #{tpu_custom_call.1} parent=31 // pred_check
          %p236 = pneg %p58
        $region34: #{tpu_custom_call.1} parent=31 // pred_check_branch
          %238 = sbr.rel (%p236) target = $region36
        $region35: #{tpu_custom_call.1} parent=31 // pred_region
          %240 = dma.done %s232, 512
        $region36: #{tpu_custom_call.1} parent=31 // pred_fallthru
          _
        %s241 = sand.u32 %s23, 1
        %s242 = scalar_lea.sflag [#allocation6], %s241
        %s243 = sand.u32 %s71, 1
        %s244 = smul.addr %s243, 32
        %s245 = scalar_lea.vmem [#allocation5], %s244
        // Predicated region
        $region37: #{tpu_custom_call.1} parent=31 // pred_check
          %p246 = pneg %p84
        $region38: #{tpu_custom_call.1} parent=31 // pred_check_branch
          %248 = sbr.rel (%p246) target = $region40
        $region39: #{tpu_custom_call.1} parent=31 // pred_region
          %250 = dma.done %s242, 512
        $region40: #{tpu_custom_call.1} parent=31 // pred_fallthru
          _
        %s251 = sand.u32 %s23, 1
        %s252 = scalar_lea.sflag [#allocation6], %s251
        %s253 = sand.u32 %s97, 1
        %s254 = smul.addr %s253, 32
        %s255 = scalar_lea.vmem [#allocation7], %s254
        // Predicated region
        $region41: #{tpu_custom_call.1} parent=31 // pred_check
          %p256 = pneg %p110
        $region42: #{tpu_custom_call.1} parent=31 // pred_check_branch
          %258 = sbr.rel (%p256) target = $region44
        $region43: #{tpu_custom_call.1} parent=31 // pred_region
          %260 = dma.done %s252, 512
        $region44: #{tpu_custom_call.1} parent=31 // pred_fallthru
          _
        %s261 = sand.u32 %s45, 1
        %s262 = scalar_lea.sflag [#allocation3], %s261
        %s263 = sand.u32 %s45, 1
        %s264 = smul.addr %s263, 32
        %s265 = scalar_lea.vmem [#allocation2], %s264
        %p266 = pneg %p58
        %p267 = pneg %p55
        %s268 = sand.u32 %s23, 1
        %s269 = scalar_lea.sflag [#allocation6], %s268
        %s270 = sand.u32 %s71, 1
        %s271 = smul.addr %s270, 32
        %s272 = scalar_lea.vmem [#allocation5], %s271
        %p273 = pneg %p84
        %p274 = pneg %p81
        %s275 = sand.u32 %s23, 1
        %s276 = scalar_lea.sflag [#allocation6], %s275
        %s277 = sand.u32 %s97, 1
        %s278 = smul.addr %s277, 32
        %s279 = scalar_lea.vmem [#allocation7], %s278
        %p280 = pneg %p110
        %p281 = pneg %p107
        %p282 = pneg %p138
        %p283 = pneg %p135
        %s284 = sand.u32 %s125, 1
        %s285 = scalar_lea.sflag [#allocation4], %s284
        %s286 = sand.u32 %s125, 1
        %s287 = smul.addr %s286, 32
        %s288 = scalar_lea.vmem [#allocation8], %s287
        %v289 = vld [vmem:[%s235] sm:$0xff]
        %v290 = vld [vmem:[%s235 + $0x8] sm:$0xff]
        %v291 = vld [vmem:[%s235 + $0x10] sm:$0xff]
        %v292 = vld [vmem:[%s235 + $0x18] sm:$0xff]
        %v293 = vmul.f32 %v289, 0.35355338
        %v294 = vmul.f32 %v290, 0.35355338
        %v295 = vmul.f32 %v291, 0.35355338
        %v296 = vmul.f32 %v292, 0.35355338
        %v297 = vld [vmem:[%s245] sm:$0xff]
        %v298 = vld [vmem:[%s245 + $0x8] sm:$0xff]
        %v299 = vld [vmem:[%s245 + $0x10] sm:$0xff]
        %v300 = vld [vmem:[%s245 + $0x18] sm:$0xff]
        %v301 = vld [vmem:[%s255] sm:$0xff]
        %v302 = vld [vmem:[%s255 + $0x8] sm:$0xff]
        %v303 = vld [vmem:[%s255 + $0x10] sm:$0xff]
        %v304 = vld [vmem:[%s255 + $0x18] sm:$0xff]
        %vm305 = vcmask 64512
        %v307 = vsel %vm305, %v293, 0
        %v310 = vsel %vm305, %v297, 0
        %312 = vmatpush.xpose.msra.mxu0 0.0
        %313 = vmatpush.xpose.msra.mxu0 0.0
        %314 = vmatpush.xpose.msra.mxu0 0.0
        %315 = vmatpush.xpose.msra.mxu0 0.0
        %316 = vmatpush.xpose.msra.mxu0 0.0
        %317 = vmatpush.xpose.msra.mxu0 0.0
        %318 = vmatpush.xpose.msra.mxu0 0.0
        %319 = vmatpush.xpose.msra.mxu0 0.0
        %320 = vmatpush.xpose.msra.mxu0 0.0
        %321 = vmatpush.xpose.msra.mxu0 0.0
        %322 = vmatpush.xpose.msra.mxu0 0.0
        %323 = vmatpush.xpose.msra.mxu0 0.0
        %324 = vmatpush.xpose.msra.mxu0 0.0
        %325 = vmatpush.xpose.msra.mxu0 0.0
        %326 = vmatpush.xpose.msra.mxu0 0.0
        %327 = vmatpush.xpose.msra.mxu0 %v310
        %328 = vmatmul.f32.gmra.mxu0 %v307
        %v329 = vpop.f32.mrf.mxu0
        %v330 = vadd.f32 0.0, %v329
        %331 = vdwg.mxu0
        %v333 = vsel %vm305, %v294, 0
        %v336 = vsel %vm305, %v298, 0
        %338 = vmatpush.xpose.msra.mxu0 0.0
        %339 = vmatpush.xpose.msra.mxu0 0.0
        %340 = vmatpush.xpose.msra.mxu0 0.0
        %341 = vmatpush.xpose.msra.mxu0 0.0
        %342 = vmatpush.xpose.msra.mxu0 0.0
        %343 = vmatpush.xpose.msra.mxu0 0.0
        %344 = vmatpush.xpose.msra.mxu0 0.0
        %345 = vmatpush.xpose.msra.mxu0 0.0
        %346 = vmatpush.xpose.msra.mxu0 0.0
        %347 = vmatpush.xpose.msra.mxu0 0.0
        %348 = vmatpush.xpose.msra.mxu0 0.0
        %349 = vmatpush.xpose.msra.mxu0 0.0
        %350 = vmatpush.xpose.msra.mxu0 0.0
        %351 = vmatpush.xpose.msra.mxu0 0.0
        %352 = vmatpush.xpose.msra.mxu0 0.0
        %353 = vmatpush.xpose.msra.mxu0 %v336
        %354 = vmatmul.f32.gmra.mxu0 %v333
        %v355 = vpop.f32.mrf.mxu0
        %v356 = vadd.f32 0.0, %v355
        %357 = vdwg.mxu0
        %v359 = vsel %vm305, %v295, 0
        %v362 = vsel %vm305, %v299, 0
        %364 = vmatpush.xpose.msra.mxu0 0.0
        %365 = vmatpush.xpose.msra.mxu0 0.0
        %366 = vmatpush.xpose.msra.mxu0 0.0
        %367 = vmatpush.xpose.msra.mxu0 0.0
        %368 = vmatpush.xpose.msra.mxu0 0.0
        %369 = vmatpush.xpose.msra.mxu0 0.0
        %370 = vmatpush.xpose.msra.mxu0 0.0
        %371 = vmatpush.xpose.msra.mxu0 0.0
        %372 = vmatpush.xpose.msra.mxu0 0.0
        %373 = vmatpush.xpose.msra.mxu0 0.0
        %374 = vmatpush.xpose.msra.mxu0 0.0
        %375 = vmatpush.xpose.msra.mxu0 0.0
        %376 = vmatpush.xpose.msra.mxu0 0.0
        %377 = vmatpush.xpose.msra.mxu0 0.0
        %378 = vmatpush.xpose.msra.mxu0 0.0
        %379 = vmatpush.xpose.msra.mxu0 %v362
        %380 = vmatmul.f32.gmra.mxu0 %v359
        %v381 = vpop.f32.mrf.mxu0
        %v382 = vadd.f32 0.0, %v381
        %383 = vdwg.mxu0
        %v385 = vsel %vm305, %v296, 0
        %v388 = vsel %vm305, %v300, 0
        %390 = vmatpush.xpose.msra.mxu0 0.0
        %391 = vmatpush.xpose.msra.mxu0 0.0
        %392 = vmatpush.xpose.msra.mxu0 0.0
        %393 = vmatpush.xpose.msra.mxu0 0.0
        %394 = vmatpush.xpose.msra.mxu0 0.0
        %395 = vmatpush.xpose.msra.mxu0 0.0
        %396 = vmatpush.xpose.msra.mxu0 0.0
        %397 = vmatpush.xpose.msra.mxu0 0.0
        %398 = vmatpush.xpose.msra.mxu0 0.0
        %399 = vmatpush.xpose.msra.mxu0 0.0
        %400 = vmatpush.xpose.msra.mxu0 0.0
        %401 = vmatpush.xpose.msra.mxu0 0.0
        %402 = vmatpush.xpose.msra.mxu0 0.0
        %403 = vmatpush.xpose.msra.mxu0 0.0
        %404 = vmatpush.xpose.msra.mxu0 0.0
        %405 = vmatpush.xpose.msra.mxu0 %v388
        %406 = vmatmul.f32.gmra.mxu0 %v385
        %v407 = vpop.f32.mrf.mxu0
        %v408 = vadd.f32 0.0, %v407
        %409 = vdwg.mxu0
        %v410 = vsel %vm305, %v330, -inf
        %411 = vmax.xlane.f32.xlu0 %v410
        %v412 = vpop.xlane.xlu0 %411
        %v413 = vsel %vm305, %v356, -inf
        %414 = vmax.xlane.f32.xlu0 %v413
        %v415 = vpop.xlane.xlu0 %414
        %v416 = vsel %vm305, %v382, -inf
        %417 = vmax.xlane.f32.xlu0 %v416
        %v418 = vpop.xlane.xlu0 %417
        %v419 = vsel %vm305, %v408, -inf
        %420 = vmax.xlane.f32.xlu0 %v419
        %v421 = vpop.xlane.xlu0 %420
        %v422 = vsub.f32 %v330, %v412
        %v423 = vsub.f32 %v356, %v415
        %v424 = vsub.f32 %v382, %v418
        %v425 = vsub.f32 %v408, %v421
        %v426 = vmul.f32 %v422, 1.442695
        %v427 = vpow.pop %v426
        %v428 = vmul.f32 %v423, 1.442695
        %v429 = vpow.pop %v428
        %v430 = vmul.f32 %v424, 1.442695
        %v431 = vpow.pop %v430
        %v432 = vmul.f32 %v425, 1.442695
        %v433 = vpow.pop %v432
        %v434 = vsel %vm305, %v427, 0.0
        %435 = vadd.xlane.f32.xlu0 %v434
        %v436 = vpop.xlane.xlu0 %435
        %v437 = vsel %vm305, %v429, 0.0
        %438 = vadd.xlane.f32.xlu0 %v437
        %v439 = vpop.xlane.xlu0 %438
        %v440 = vsel %vm305, %v431, 0.0
        %441 = vadd.xlane.f32.xlu0 %v440
        %v442 = vpop.xlane.xlu0 %441
        %v443 = vsel %vm305, %v433, 0.0
        %444 = vadd.xlane.f32.xlu0 %v443
        %v445 = vpop.xlane.xlu0 %444
        %v447 = vsel %vm305, %v427, 0
        %449 = vmatpush.msra.mxu0 0.0
        %450 = vmatpush.msra.mxu0 0.0
        %451 = vmatpush.msra.mxu0 0.0
        %452 = vmatpush.msra.mxu0 0.0
        %453 = vmatpush.msra.mxu0 0.0
        %454 = vmatpush.msra.mxu0 0.0
        %455 = vmatpush.msra.mxu0 0.0
        %456 = vmatpush.msra.mxu0 0.0
        %457 = vmatpush.msra.mxu0 0.0
        %458 = vmatpush.msra.mxu0 0.0
        %459 = vmatpush.msra.mxu0 0.0
        %460 = vmatpush.msra.mxu0 0.0
        %461 = vmatpush.msra.mxu0 0.0
        %462 = vmatpush.msra.mxu0 0.0
        %463 = vmatpush.msra.mxu0 0.0
        %464 = vmatpush.msra.mxu0 %v301
        %465 = vmatmul.f32.gmra.mxu0 %v447
        %v466 = vpop.f32.mrf.mxu0
        %v467 = vadd.f32 0.0, %v466
        %468 = vdwg.mxu0
        %v470 = vsel %vm305, %v429, 0
        %472 = vmatpush.msra.mxu0 0.0
        %473 = vmatpush.msra.mxu0 0.0
        %474 = vmatpush.msra.mxu0 0.0
        %475 = vmatpush.msra.mxu0 0.0
        %476 = vmatpush.msra.mxu0 0.0
        %477 = vmatpush.msra.mxu0 0.0
        %478 = vmatpush.msra.mxu0 0.0
        %479 = vmatpush.msra.mxu0 0.0
        %480 = vmatpush.msra.mxu0 0.0
        %481 = vmatpush.msra.mxu0 0.0
        %482 = vmatpush.msra.mxu0 0.0
        %483 = vmatpush.msra.mxu0 0.0
        %484 = vmatpush.msra.mxu0 0.0
        %485 = vmatpush.msra.mxu0 0.0
        %486 = vmatpush.msra.mxu0 0.0
        %487 = vmatpush.msra.mxu0 %v302
        %488 = vmatmul.f32.gmra.mxu0 %v470
        %v489 = vpop.f32.mrf.mxu0
        %v490 = vadd.f32 0.0, %v489
        %491 = vdwg.mxu0
        %v493 = vsel %vm305, %v431, 0
        %495 = vmatpush.msra.mxu0 0.0
        %496 = vmatpush.msra.mxu0 0.0
        %497 = vmatpush.msra.mxu0 0.0
        %498 = vmatpush.msra.mxu0 0.0
        %499 = vmatpush.msra.mxu0 0.0
        %500 = vmatpush.msra.mxu0 0.0
        %501 = vmatpush.msra.mxu0 0.0
        %502 = vmatpush.msra.mxu0 0.0
        %503 = vmatpush.msra.mxu0 0.0
        %504 = vmatpush.msra.mxu0 0.0
        %505 = vmatpush.msra.mxu0 0.0
        %506 = vmatpush.msra.mxu0 0.0
        %507 = vmatpush.msra.mxu0 0.0
        %508 = vmatpush.msra.mxu0 0.0
        %509 = vmatpush.msra.mxu0 0.0
        %510 = vmatpush.msra.mxu0 %v303
        %511 = vmatmul.f32.gmra.mxu0 %v493
        %v512 = vpop.f32.mrf.mxu0
        %v513 = vadd.f32 0.0, %v512
        %514 = vdwg.mxu0
        %v516 = vsel %vm305, %v433, 0
        %518 = vmatpush.msra.mxu0 0.0
        %519 = vmatpush.msra.mxu0 0.0
        %520 = vmatpush.msra.mxu0 0.0
        %521 = vmatpush.msra.mxu0 0.0
        %522 = vmatpush.msra.mxu0 0.0
        %523 = vmatpush.msra.mxu0 0.0
        %524 = vmatpush.msra.mxu0 0.0
        %525 = vmatpush.msra.mxu0 0.0
        %526 = vmatpush.msra.mxu0 0.0
        %527 = vmatpush.msra.mxu0 0.0
        %528 = vmatpush.msra.mxu0 0.0
        %529 = vmatpush.msra.mxu0 0.0
        %530 = vmatpush.msra.mxu0 0.0
        %531 = vmatpush.msra.mxu0 0.0
        %532 = vmatpush.msra.mxu0 0.0
        %533 = vmatpush.msra.mxu0 %v304
        %534 = vmatmul.f32.gmra.mxu0 %v516
        %v535 = vpop.f32.mrf.mxu0
        %v536 = vadd.f32 0.0, %v535
        %537 = vdwg.mxu0
        %v538 = vrcp.pop %v436
        %v539 = vrcp.pop %v439
        %v540 = vrcp.pop %v442
        %v541 = vrcp.pop %v445
        %v542 = vmul.f32 %v467, %v538
        %v543 = vmul.f32 %v490, %v539
        %v544 = vmul.f32 %v513, %v540
        %v545 = vmul.f32 %v536, %v541
        %546 = vst.msk [vmem:[%s288] sm:$0xff] %vm305, %v542
        %547 = vst.msk [vmem:[%s288 + $0x8] sm:$0xff] %vm305, %v543
        %548 = vst.msk [vmem:[%s288 + $0x10] sm:$0xff] %vm305, %v544
        %549 = vst.msk [vmem:[%s288 + $0x18] sm:$0xff] %vm305, %v545
        %s550 = sand.u32 %s125, 1
        %s551 = scalar_lea.sflag [#allocation4], %s550
        %s552 = sand.u32 %s125, 1
        %s553 = smul.addr %s552, 32
        %s554 = scalar_lea.vmem [#allocation8], %s553
        // Predicated region
        $region45: #{tpu_custom_call.1} parent=31 // pred_check
          %p555 = pneg %p135
        $region46: #{tpu_custom_call.1} parent=31 // pred_check_branch
          %557 = sbr.rel (%p555) target = $region48
        $region47: #{tpu_custom_call.1} parent=31 // pred_region
          %559 = vsyncadd %s551, 0
          %s560 = smul.addr %s27, 4
          %s561 = sadd.s32 %s28, %s560
          %s562 = smul.addr %s561, 8
          %s563 = scalar_lea.hbm %s3, %s562
          %s564 = sshll.u32 %s554, 4
          %s565 = int_to_ptr.vmem [resolvable:$true] %s564
          %s566 = sshll.u32 %s563, 4
          %s567 = int_to_ptr.hbm [resolvable:$true] %s566
          %572 = dma.vmem_to_hbm [thread:$0]  %s565, 512, %s567, %s551, 128, 128, 8
        $region48: #{tpu_custom_call.1} parent=31 // pred_fallthru
          _
      $region32: #{tpu_custom_call.1} parent=5 // pred_fallthru
        _
      %p573 = scmp.le.s32.totalorder 2, %s18
      // Predicated region
      $region49: #{tpu_custom_call.1} parent=5 // pred_check
        %p574 = pneg %p573
      $region50: #{tpu_custom_call.1} parent=5 // pred_check_branch
        %576 = sbr.rel (%p574) target = $region52
      $region51: #{tpu_custom_call.1} parent=5 // pred_region
        %s577 = ssub.s32 %s18, 2
        // Predicated region
        $region53: #{tpu_custom_call.1} parent=51 // pred_check
          %p578 = pneg %p141
        $region54: #{tpu_custom_call.1} parent=51 // pred_check_branch
          %580 = sbr.rel (%p578) target = $region56
        $region55: #{tpu_custom_call.1} parent=51 // pred_region
          %s581 = sand.u32 %s126, 1
          %s582 = scalar_lea.sflag [#allocation4], %s581
          %s583 = sand.u32 %s126, 1
          %s584 = smul.addr %s583, 32
          %s585 = scalar_lea.vmem [#allocation8], %s584
          %587 = dma.done %s582, 512
        $region56: #{tpu_custom_call.1} parent=51 // pred_fallthru
          _
      $region52: #{tpu_custom_call.1} parent=5 // pred_fallthru
        _
    $region6: #{tpu_custom_call.1} parent=1 // loop_footer
      %s22 = sadd.s32 1, %s18
    $region7: #{tpu_custom_call.1} parent=1 // loop_footer_branch
      %17 = sbr.rel target = $region3
    $region8: #{tpu_custom_call.1} parent=1 // loop_exit
      _
    %588 = vsyncpa [#allocation3], 1
    %s589 = scalar_lea.sflag [#allocation3], 1
    %590 = vsyncpa %s589, 1
    %591 = vsyncpa [#allocation6], 1
    %s592 = scalar_lea.sflag [#allocation6], 1
    %593 = vsyncpa %s592, 1
    %594 = vsyncpa [#allocation4], 1
    %s595 = scalar_lea.sflag [#allocation4], 1
    %596 = vsyncpa %s595, 1

</llo_original>
